<compile_context>
chip_gen: v6e
topology: v6e:2x2x1
jax: 0.10.0
libtpu: 0.0.40
codegen_flags: <defaults>
</compile_context>

<pallas_src>
import jax
import jax.numpy as jnp
from jax.experimental import pallas as pl
from jax.experimental.pallas import tpu as pltpu


def _round_up(x, m):
    return ((x + m - 1) // m) * m


def _attention_kernel(seq_ref, ctx_ref, wq_ref, bq_ref, wkt_ref, bk_ref,
                      wv_ref, bv_ref, out_ref, attn_ref):
    # Per-grid-step refs (one batch block of TB rows):
    #   seq_ref : (TB, S, Din)  input dtype (no wrapper-side cast)
    #   ctx_ref : (TB, Din)     input dtype
    #   wq_ref  : (Din, D)      compute dtype
    #   bq_ref  : (1, D)        f32
    #   wkt_ref : (D, Din)      compute dtype  (Wk transposed once at init)
    #   bk_ref  : (1, D)        f32
    #   wv_ref  : (Din, Dp)     compute dtype  (Dp = D rounded up to 128 lanes)
    #   bv_ref  : (1, Dp)       f32
    #   out_ref : (TB, Dp)      f32            (lane-dense store)
    #   attn_ref: (TB, S)       f32
    cdt = wq_ref.dtype                 # MXU compute dtype (bf16 or f32)
    seq = seq_ref[...]                 # (TB, S, Din); VPU math promotes to f32 below

    # query = context @ Wq + bq                     (MXU, f32 accumulation)
    q = jnp.dot(ctx_ref[...].astype(cdt), wq_ref[...],
                preferred_element_type=jnp.float32) + bq_ref[...]           # (TB, D) f32

    # kq[b] = Wk @ query[b]  ==  query @ Wk^T        (MXU)
    kq = jnp.dot(q.astype(cdt), wkt_ref[...],
                 preferred_element_type=jnp.float32)                         # (TB, Din) f32

    # scores[b, s] = <key[b,s], q[b]> = <seq[b,s], kq[b]> + <bk, q[b]>
    sbias = jnp.sum(q * bk_ref[...], axis=-1, keepdims=True)                 # (TB, 1)
    scores = jnp.sum(seq * kq[:, None, :], axis=-1) + sbias                  # (TB, S) f32

    # softmax over the sequence axis (f32, exact denominator so sum(weights) == 1)
    m = jnp.max(scores, axis=-1, keepdims=True)
    e = jnp.exp(scores - m)
    denom = jnp.sum(e, axis=-1, keepdims=True)
    weights = e / denom                                                      # (TB, S) f32
    attn_ref[...] = weights.astype(attn_ref.dtype)

    # out[b] = sum_s w[b,s] * value[b,s]
    #        = (sum_s w[b,s] * seq[b,s]) @ Wv + bv * sum_s w[b,s]
    ws = jnp.sum(weights[:, :, None] * seq, axis=1)                          # (TB, Din) f32
    wsum = jnp.sum(weights, axis=-1, keepdims=True)                          # (TB, 1) ~= 1
    out = jnp.dot(ws.astype(cdt), wv_ref[...],
                  preferred_element_type=jnp.float32) + bv_ref[...] * wsum   # (TB, Dp)
    out_ref[...] = out.astype(out_ref.dtype)


def prepare_attention_params(wq, bq, wk, bk, wv, bv, *, compute_dtype=jnp.bfloat16):
    """One-time parameter preparation (call at init time, NOT per forward call).

    - Wk is pre-transposed to (D, Din) for the `query @ Wk^T` fold.
    - Wv / bv are zero-padded on the output dim to a multiple of 128 lanes so the
      kernel's main output store is lane-dense (wrapper slices back to D).
    - Matmul weights are cast to compute_dtype once; biases stay f32.
    Weights are (input_dim, output_dim) = torch nn.Linear.weight.T; biases are (out,).
    """
    din, d = wq.shape
    dp = _round_up(d, 128)
    if dp != d:
        wv_p = jnp.zeros((din, dp), wv.dtype).at[:, :d].set(wv)
        bv_p = jnp.zeros((dp,), bv.dtype).at[:d].set(bv)
    else:
        wv_p, bv_p = wv, bv
    return dict(
        d=int(d), d_pad=int(dp),
        wq=wq.astype(compute_dtype),
        wk_t=wk.T.astype(compute_dtype),
        wv=wv_p.astype(compute_dtype),
        bq=bq.reshape(1, d).astype(jnp.float32),
        bk=bk.reshape(1, d).astype(jnp.float32),
        bv=bv_p.reshape(1, dp).astype(jnp.float32),
    )


def _vmem_limit_bytes():
    try:
        cap = int(pltpu.get_tpu_info().vmem_capacity_bytes)
    except Exception:
        cap = 64 * 1024 * 1024          # conservative fallback (v7x per-TensorCore VMEM)
    return int(cap * 0.85)              # leave headroom for compiler scratch


def _choose_block_b(B, S, Din, Dp, seq_bytes, ctx_bytes, weight_bytes, block_budget):
    # Padding-aware starting point: smallest multiple of 8 (<=128) that keeps the
    # number of grid steps equal to cdiv(B, 128) -> worst-case batch padding < 8 rows/step.
    tb = min(128, _round_up(pl.cdiv(B, pl.cdiv(B, 128)), 8))
    # Per-batch-row VMEM footprint of the pipelined blocks (+ f32 intermediates headroom).
    per_row = (2 * S * Din * seq_bytes          # seq block, double-buffered
               + 2 * Din * ctx_bytes            # context block, double-buffered
               + 2 * S * Din * 4                # f32 broadcast intermediates (score/ws paths)
               + 2 * Dp * 4 + 2 * S * 4)        # output blocks, double-buffered
    avail = max(block_budget - weight_bytes, 8 * per_row)
    tb_fit = max(8, int(avail // per_row) // 8 * 8)
    tb = min(tb, tb_fit)
    # v7x megacore: keep >=2 "parallel" batch steps when possible so both TensorCores
    # get work (and the seq DMA overlaps compute).
    if pl.cdiv(B, tb) < 2 and tb > 8:
        tb = max(8, _round_up(pl.cdiv(B, 2), 8))
    return int(tb)


def attention_pallas(seq, context, params, *, block_b=None):
    """seq: (B, S, Din), context: (B, Din); params from prepare_attention_params().
    Returns (weighted_sum (B, D) f32, attention_weights (B, S) f32)."""
    B, S, Din = seq.shape
    D, Dp = params["d"], params["d_pad"]
    cbytes = jnp.dtype(params["wq"].dtype).itemsize

    vmem_limit = _vmem_limit_bytes()
    weight_bytes = (Din * D + D * Din + Din * Dp) * cbytes + (2 * D + Dp) * 4
    if block_b is None:
        block_b = _choose_block_b(B, S, Din, Dp,
                                  jnp.dtype(seq.dtype).itemsize,
                                  jnp.dtype(context.dtype).itemsize,
                                  weight_bytes,
                                  block_budget=int(vmem_limit * 0.75))
    TB = int(block_b)
    B_pad = _round_up(B, TB)

    seq_p, ctx_p = seq, context
    if B_pad != B:
        seq_p = jnp.pad(seq, ((0, B_pad - B), (0, 0), (0, 0)))
        ctx_p = jnp.pad(context, ((0, B_pad - B), (0, 0)))

    grid = (B_pad // TB,)
    buf1 = pl.Buffered(1)   # weights/biases are grid-invariant: single VMEM buffer

    grid_spec = pltpu.PrefetchScalarGridSpec(
        num_scalar_prefetch=0,
        grid=grid,
        in_specs=[
            pl.BlockSpec((TB, S, Din), lambda b: (b, 0, 0)),                    # seq
            pl.BlockSpec((TB, Din),    lambda b: (b, 0)),                       # context
            pl.BlockSpec((Din, D),  lambda b: (0, 0), pipeline_mode=buf1),      # Wq
            pl.BlockSpec((1, D),    lambda b: (0, 0), pipeline_mode=buf1),      # bq
            pl.BlockSpec((D, Din),  lambda b: (0, 0), pipeline_mode=buf1),      # Wk^T
            pl.BlockSpec((1, D),    lambda b: (0, 0), pipeline_mode=buf1),      # bk
            pl.BlockSpec((Din, Dp), lambda b: (0, 0), pipeline_mode=buf1),      # Wv (padded)
            pl.BlockSpec((1, Dp),   lambda b: (0, 0), pipeline_mode=buf1),      # bv (padded)
        ],
        out_specs=[
            pl.BlockSpec((TB, Dp), lambda b: (b, 0)),       # weighted_sum (lane-dense)
            pl.BlockSpec((TB, S),  lambda b: (b, 0)),       # attention_weights
        ],
    )

    out_pad, attn_pad = pl.pallas_call(
        _attention_kernel,
        out_shape=(
            jax.ShapeDtypeStruct((B_pad, Dp), jnp.float32),
            jax.ShapeDtypeStruct((B_pad, S), jnp.float32),
        ),
        grid_spec=grid_spec,
        compiler_params=pltpu.CompilerParams(
            dimension_semantics=("parallel",),
            vmem_limit_bytes=vmem_limit),
    )(seq_p, ctx_p, params["wq"], params["bq"], params["wk_t"], params["bk"],
      params["wv"], params["bv"])

    # TODO(synk): for very large Din or S, add a reduction grid axis (Din-tiled kq/ws
    # accumulation, or flash-style online softmax over S) so per-step VMEM stays
    # bounded on v7x (64 MiB) without shrinking TB.
    return out_pad[:B, :D], attn_pad[:B]


def attention_ref(seq, context, wq, bq, wk, bk, wv, bv):
    """Pure-JAX f32 reference mirroring the PyTorch forward."""
    query = context @ wq + bq                                    # (B, D)
    key = jnp.einsum("bsi,io->bso", seq, wk) + bk                # (B, S, D)
    value = jnp.einsum("bsi,io->bso", seq, wv) + bv              # (B, S, D)
    scores = jnp.einsum("bsd,bd->bs", key, query)                # (B, S)
    weights = jax.nn.softmax(scores, axis=-1)                    # (B, S)
    out = jnp.einsum("bs,bsd->bd", weights, value)               # (B, D)
    return out, weights


if __name__ == "__main__":
    B, S, INPUT_DIM, OUTPUT_DIM = 2, 8, 32, 32

    key0 = jax.random.PRNGKey(0)
    ks = jax.random.split(key0, 8)

    seq = jax.random.normal(ks[0], (B, S, INPUT_DIM), dtype=jnp.float32)
    context = jax.random.normal(ks[1], (B, INPUT_DIM), dtype=jnp.float32)

    # Deterministic parameter init (uniform, roughly matching nn.Linear scale).
    bound = 1.0 / jnp.sqrt(INPUT_DIM)
    wq = jax.random.uniform(ks[2], (INPUT_DIM, OUTPUT_DIM), jnp.float32, -bound, bound)
    wk = jax.random.uniform(ks[3], (INPUT_DIM, OUTPUT_DIM), jnp.float32, -bound, bound)
    wv = jax.random.uniform(ks[4], (INPUT_DIM, OUTPUT_DIM), jnp.float32, -bound, bound)
    bq = jax.random.uniform(ks[5], (OUTPUT_DIM,), jnp.float32, -bound, bound)
    bk = jax.random.uniform(ks[6], (OUTPUT_DIM,), jnp.float32, -bound, bound)
    bv = jax.random.uniform(ks[7], (OUTPUT_DIM,), jnp.float32, -bound, bound)

    r_out, r_attn = attention_ref(seq, context, wq, bq, wk, bk, wv, bv)

    # --- f32 compute path: strict structural / numerical check ---
    params32 = prepare_attention_params(wq, bq, wk, bk, wv, bv, compute_dtype=jnp.float32)
    fwd32 = jax.jit(lambda s, c: attention_pallas(s, c, params32))
    out32, attn32 = jax.block_until_ready(fwd32(seq, context))
    assert out32.shape == (B, OUTPUT_DIM) and attn32.shape == (B, S)
    assert jnp.allclose(out32, r_out, atol=1e-3, rtol=1e-3)
    assert jnp.allclose(attn32, r_attn, atol=1e-3, rtol=1e-3)
    # Exact softmax denominator -> weights sum to 1 (no approx-reciprocal drift).
    assert jnp.allclose(jnp.sum(attn32, axis=-1), 1.0, atol=1e-4)

    # --- bf16-input / f32-accumulate path (MXU-friendly on v5e/v6e/v7x) ---
    params_bf = prepare_attention_params(wq, bq, wk, bk, wv, bv, compute_dtype=jnp.bfloat16)
    fwd_bf = jax.jit(lambda s, c: attention_pallas(s, c, params_bf))
    out_bf, attn_bf = jax.block_until_ready(fwd_bf(seq, context))
    assert jnp.allclose(out_bf, r_out, atol=5e-2, rtol=5e-2)
    assert jnp.allclose(attn_bf, r_attn, atol=5e-2, rtol=5e-2)

    print("KERNEL_OK")
</pallas_src>

<mosaic_0001>
module attributes {stable_mosaic.version = 11 : i64} {
  func.func @_attention_kernel(%arg0: i32, %arg1: memref<8x8x32xf32, #tpu.memory_space<vmem>>, %arg2: memref<8x32xf32, #tpu.memory_space<vmem>>, %arg3: memref<32x32xf32, #tpu.memory_space<vmem>>, %arg4: memref<1x32xf32, #tpu.memory_space<vmem>>, %arg5: memref<32x32xf32, #tpu.memory_space<vmem>>, %arg6: memref<1x32xf32, #tpu.memory_space<vmem>>, %arg7: memref<32x128xf32, #tpu.memory_space<vmem>>, %arg8: memref<1x128xf32, #tpu.memory_space<vmem>>, %arg9: memref<8x128xf32, #tpu.memory_space<vmem>>, %arg10: memref<8x8xf32, #tpu.memory_space<vmem>>) attributes {dimension_semantics = [#tpu.dimension_semantics<parallel>], iteration_bounds = array<i64: 1>, scalar_prefetch = 0 : i64, scratch_operands = 0 : i64, tpu.core_type = #tpu.core_type<tc>, window_params = [{transform_indices = @transform_0, window_bounds = array<i64: 8, 8, 32>}, {transform_indices = @transform_1, window_bounds = array<i64: 8, 32>}, {pipeline_mode = #tpu.pipeline_mode<synchronous>, transform_indices = @transform_2, window_bounds = array<i64: 32, 32>}, {pipeline_mode = #tpu.pipeline_mode<synchronous>, transform_indices = @transform_3, window_bounds = array<i64: 1, 32>}, {pipeline_mode = #tpu.pipeline_mode<synchronous>, transform_indices = @transform_4, window_bounds = array<i64: 32, 32>}, {pipeline_mode = #tpu.pipeline_mode<synchronous>, transform_indices = @transform_5, window_bounds = array<i64: 1, 32>}, {pipeline_mode = #tpu.pipeline_mode<synchronous>, transform_indices = @transform_6, window_bounds = array<i64: 32, 128>}, {pipeline_mode = #tpu.pipeline_mode<synchronous>, transform_indices = @transform_7, window_bounds = array<i64: 1, 128>}, {transform_indices = @transform_8, window_bounds = array<i64: 8, 128>}, {transform_indices = @transform_9, window_bounds = array<i64: 8, 8>}]} {
    %c0 = arith.constant 0 : index
    %c0_0 = arith.constant 0 : index
    %c0_1 = arith.constant 0 : index
    %0 = vector.load %arg1[%c0, %c0_0, %c0_1] : memref<8x8x32xf32, #tpu.memory_space<vmem>>, vector<8x8x32xf32>
    %c0_2 = arith.constant 0 : index
    %c0_3 = arith.constant 0 : index
    %1 = vector.load %arg2[%c0_2, %c0_3] : memref<8x32xf32, #tpu.memory_space<vmem>>, vector<8x32xf32>
    %c0_4 = arith.constant 0 : index
    %c0_5 = arith.constant 0 : index
    %2 = vector.load %arg3[%c0_4, %c0_5] : memref<32x32xf32, #tpu.memory_space<vmem>>, vector<32x32xf32>
    %cst = arith.constant dense<0.000000e+00> : vector<8x32xf32>
    %3 = tpu.matmul %1, %2, %cst {dimension_numbers = #tpu.dot_dimension_numbers<[1], [0], [0], [1], [0, 0, 1, 1], [], []>} : vector<8x32xf32>, vector<32x32xf32>, vector<8x32xf32> -> vector<8x32xf32>
    %c0_6 = arith.constant 0 : index
    %c0_7 = arith.constant 0 : index
    %4 = vector.load %arg4[%c0_6, %c0_7] : memref<1x32xf32, #tpu.memory_space<vmem>>, vector<1x32xf32>
    %5 = vector.broadcast %4 : vector<1x32xf32> to vector<8x32xf32>
    %6 = arith.addf %3, %5 : vector<8x32xf32>
    %c0_8 = arith.constant 0 : index
    %c0_9 = arith.constant 0 : index
    %7 = vector.load %arg5[%c0_8, %c0_9] : memref<32x32xf32, #tpu.memory_space<vmem>>, vector<32x32xf32>
    %cst_10 = arith.constant dense<0.000000e+00> : vector<8x32xf32>
    %8 = tpu.matmul %6, %7, %cst_10 {dimension_numbers = #tpu.dot_dimension_numbers<[1], [0], [0], [1], [0, 0, 1, 1], [], []>} : vector<8x32xf32>, vector<32x32xf32>, vector<8x32xf32> -> vector<8x32xf32>
    %c0_11 = arith.constant 0 : index
    %c0_12 = arith.constant 0 : index
    %9 = vector.load %arg6[%c0_11, %c0_12] : memref<1x32xf32, #tpu.memory_space<vmem>>, vector<1x32xf32>
    %10 = vector.broadcast %9 : vector<1x32xf32> to vector<8x32xf32>
    %11 = arith.mulf %6, %10 : vector<8x32xf32>
    %cst_13 = arith.constant dense<0.000000e+00> : vector<8xf32>
    %12 = vector.multi_reduction <add>, %11, %cst_13 [1] : vector<8x32xf32> to vector<8xf32>
    %13 = vector.shape_cast %12 : vector<8xf32> to vector<8x1xf32>
    %14 = vector.shape_cast %8 : vector<8x32xf32> to vector<8x1x32xf32>
    %15 = vector.broadcast %14 : vector<8x1x32xf32> to vector<8x8x32xf32>
    %16 = arith.mulf %0, %15 : vector<8x8x32xf32>
    %cst_14 = arith.constant dense<0.000000e+00> : vector<8x8xf32>
    %17 = vector.multi_reduction <add>, %16, %cst_14 [2] : vector<8x8x32xf32> to vector<8x8xf32>
    %18 = vector.broadcast %13 : vector<8x1xf32> to vector<8x8xf32>
    %19 = arith.addf %17, %18 : vector<8x8xf32>
    %cst_15 = arith.constant dense<0xFF800000> : vector<8xf32>
    %20 = vector.multi_reduction <maximumf>, %19, %cst_15 [1] : vector<8x8xf32> to vector<8xf32>
    %21 = vector.shape_cast %20 : vector<8xf32> to vector<8x1xf32>
    %22 = vector.broadcast %21 : vector<8x1xf32> to vector<8x8xf32>
    %23 = arith.subf %19, %22 : vector<8x8xf32>
    %24 = math.exp %23 : vector<8x8xf32>
    %cst_16 = arith.constant dense<0.000000e+00> : vector<8xf32>
    %25 = vector.multi_reduction <add>, %24, %cst_16 [1] : vector<8x8xf32> to vector<8xf32>
    %26 = vector.shape_cast %25 : vector<8xf32> to vector<8x1xf32>
    %27 = vector.broadcast %26 : vector<8x1xf32> to vector<8x8xf32>
    %28 = arith.divf %24, %27 : vector<8x8xf32>
    %c0_17 = arith.constant 0 : index
    %c0_18 = arith.constant 0 : index
    %29 = vector.load %arg10[%c0_17, %c0_18] : memref<8x8xf32, #tpu.memory_space<vmem>>, vector<8x8xf32>
    tpu.vector_store %arg10[%c0_17, %c0_18], %28 {strides = array<i32>} : memref<8x8xf32, #tpu.memory_space<vmem>>, vector<8x8xf32>,
    %30 = vector.shape_cast %28 : vector<8x8xf32> to vector<8x8x1xf32>
    %31 = vector.broadcast %30 : vector<8x8x1xf32> to vector<8x8x32xf32>
    %32 = arith.mulf %31, %0 : vector<8x8x32xf32>
    %cst_19 = arith.constant dense<0.000000e+00> : vector<8x32xf32>
    %33 = vector.multi_reduction <add>, %32, %cst_19 [1] : vector<8x8x32xf32> to vector<8x32xf32>
    %cst_20 = arith.constant dense<0.000000e+00> : vector<8xf32>
    %34 = vector.multi_reduction <add>, %28, %cst_20 [1] : vector<8x8xf32> to vector<8xf32>
    %35 = vector.shape_cast %34 : vector<8xf32> to vector<8x1xf32>
    %c0_21 = arith.constant 0 : index
    %c0_22 = arith.constant 0 : index
    %36 = vector.load %arg7[%c0_21, %c0_22] : memref<32x128xf32, #tpu.memory_space<vmem>>, vector<32x128xf32>
    %cst_23 = arith.constant dense<0.000000e+00> : vector<8x128xf32>
    %37 = tpu.matmul %33, %36, %cst_23 {dimension_numbers = #tpu.dot_dimension_numbers<[1], [0], [0], [1], [0, 0, 1, 1], [], []>} : vector<8x32xf32>, vector<32x128xf32>, vector<8x128xf32> -> vector<8x128xf32>
    %c0_24 = arith.constant 0 : index
    %c0_25 = arith.constant 0 : index
    %38 = vector.load %arg8[%c0_24, %c0_25] : memref<1x128xf32, #tpu.memory_space<vmem>>, vector<1x128xf32>
    %39 = vector.broadcast %38 : vector<1x128xf32> to vector<8x128xf32>
    %40 = vector.broadcast %35 : vector<8x1xf32> to vector<8x128xf32>
    %41 = arith.mulf %39, %40 : vector<8x128xf32>
    %42 = arith.addf %37, %41 : vector<8x128xf32>
    %c0_26 = arith.constant 0 : index
    %c0_27 = arith.constant 0 : index
    %43 = vector.load %arg9[%c0_26, %c0_27] : memref<8x128xf32, #tpu.memory_space<vmem>>, vector<8x128xf32>
    tpu.vector_store %arg9[%c0_26, %c0_27], %42 {strides = array<i32>} : memref<8x128xf32, #tpu.memory_space<vmem>>, vector<8x128xf32>,
    return
  }
  func.func @transform_0(%arg0: i32) -> (i32, i32, i32) {
    %c0_i32 = arith.constant 0 : i32
    %c0_i32_0 = arith.constant 0 : i32
    %c0_i32_1 = arith.constant 0 : i32
    return %arg0, %c0_i32, %c0_i32_0 : i32, i32, i32
  }
  func.func @transform_1(%arg0: i32) -> (i32, i32) {
    %c0_i32 = arith.constant 0 : i32
    %c0_i32_0 = arith.constant 0 : i32
    return %arg0, %c0_i32 : i32, i32
  }
  func.func @transform_2(%arg0: i32) -> (i32, i32) {
    %c0_i32 = arith.constant 0 : i32
    %c0_i32_0 = arith.constant 0 : i32
    %c0_i32_1 = arith.constant 0 : i32
    return %c0_i32, %c0_i32_0 : i32, i32
  }
  func.func @transform_3(%arg0: i32) -> (i32, i32) {
    %c0_i32 = arith.constant 0 : i32
    %c0_i32_0 = arith.constant 0 : i32
    %c0_i32_1 = arith.constant 0 : i32
    return %c0_i32, %c0_i32_0 : i32, i32
  }
  func.func @transform_4(%arg0: i32) -> (i32, i32) {
    %c0_i32 = arith.constant 0 : i32
    %c0_i32_0 = arith.constant 0 : i32
    %c0_i32_1 = arith.constant 0 : i32
    return %c0_i32, %c0_i32_0 : i32, i32
  }
  func.func @transform_5(%arg0: i32) -> (i32, i32) {
    %c0_i32 = arith.constant 0 : i32
    %c0_i32_0 = arith.constant 0 : i32
    %c0_i32_1 = arith.constant 0 : i32
    return %c0_i32, %c0_i32_0 : i32, i32
  }
  func.func @transform_6(%arg0: i32) -> (i32, i32) {
    %c0_i32 = arith.constant 0 : i32
    %c0_i32_0 = arith.constant 0 : i32
    %c0_i32_1 = arith.constant 0 : i32
    return %c0_i32, %c0_i32_0 : i32, i32
  }
  func.func @transform_7(%arg0: i32) -> (i32, i32) {
    %c0_i32 = arith.constant 0 : i32
    %c0_i32_0 = arith.constant 0 : i32
    %c0_i32_1 = arith.constant 0 : i32
    return %c0_i32, %c0_i32_0 : i32, i32
  }
  func.func @transform_8(%arg0: i32) -> (i32, i32) {
    %c0_i32 = arith.constant 0 : i32
    %c0_i32_0 = arith.constant 0 : i32
    return %arg0, %c0_i32 : i32, i32
  }
  func.func @transform_9(%arg0: i32) -> (i32, i32) {
    %c0_i32 = arith.constant 0 : i32
    %c0_i32_0 = arith.constant 0 : i32
    return %arg0, %c0_i32 : i32, i32
  }
}

</mosaic_0001>

<llo_original>
// kernel: _lambda_.1
$region0: #{_lambda_.1}
  #allocation0 [shape = 'u32[]', space=smem, size = 0x4, offset = 0x4, fixed_abs, tag = 'smem constant byte address 0x4 - core index']
  #allocation1 [shape = 'u32[144,128]{1,0:T(1,128)}', space=vmem, size = 0x12000, scoped, tag = 'internal scratch']
  %s0 = inlined_call_operand.vmem [shape: f32[8,8,32], index: 0, kind: input, shape index: {}]
  %s1 = inlined_call_operand.vmem [shape: f32[8,32], index: 1, kind: input, shape index: {}]
  %s2 = inlined_call_operand.hbm [shape: f32[32,32], index: 2, kind: input, shape index: {}]
  %s3 = inlined_call_operand.vmem [shape: f32[1,32], index: 3, kind: input, shape index: {}]
  %s4 = inlined_call_operand.vmem [shape: f32[32,32], index: 4, kind: input, shape index: {}]
  %s5 = inlined_call_operand.vmem [shape: f32[1,32], index: 5, kind: input, shape index: {}]
  %s6 = inlined_call_operand.vmem [shape: f32[32,128], index: 6, kind: input, shape index: {}]
  %s7 = inlined_call_operand.vmem [shape: f32[1,128], index: 7, kind: input, shape index: {}]
  %s8 = inlined_call_operand.vmem [shape: f32[8,128], index: 8, kind: output, shape index: {0}]
  %s9 = inlined_call_operand.vmem [shape: f32[8,8], index: 9, kind: output, shape index: {1}]
  %10 = xla_tuple %s8, %s9
  %s11 = sld [smem:[#allocation0]]
  $region54: #{_lambda_.1} parent=0
    _
  %s13 = ssub.s32 1, %s11
  %s14 = scalar_select 0, %s13, %s11
  $region1: #{_lambda_.1} parent=0
    #allocation2 [shape = 'u8[16384]{0}', space=vmem, size = 0x4000, scoped, tag = 'input window, operand 2, single buffered']
    #allocation3 [shape = 's32[1]{0}', space=sflag, size = 0x4, scoped, tag = 'scoped memory for _lambda_.1']
    %15 = vsyncpa [#allocation3], 0
    // Predicated region
    $region2: #{_lambda_.1} parent=1 // pred_check
      _
    $region3: #{_lambda_.1} parent=1 // pred_check_branch
      %17 = sbr.rel (0) target = $region5
    $region4: #{_lambda_.1} parent=1 // pred_region
      _
    $region5: #{_lambda_.1} parent=1 // pred_fallthru
      _
    // Predicated region
    $region6: #{_lambda_.1} parent=1 // pred_check
      _
    $region7: #{_lambda_.1} parent=1 // pred_check_branch
      %19 = sbr.rel (0) target = $region9
    $region8: #{_lambda_.1} parent=1 // pred_region
      _
    $region9: #{_lambda_.1} parent=1 // pred_fallthru
      _
    // Predicated region
    $region10: #{_lambda_.1} parent=1 // pred_check
      _
    $region11: #{_lambda_.1} parent=1 // pred_check_branch
      %21 = sbr.rel (0) target = $region13
    $region12: #{_lambda_.1} parent=1 // pred_region
      %s23 = ssub.s32 512, 512
      %24 = vsyncadd [#allocation3], %s23
      %s25 = sshll.u32 [#allocation2], 4
      %s26 = int_to_ptr.vmem [resolvable:$true] %s25
      %31 = dma.hbm_to_vmem [thread:$0]  %s2, 512, %s26, [#allocation3], 128, 128, 8
    $region13: #{_lambda_.1} parent=1 // pred_fallthru
      _
    // Predicated region
    $region14: #{_lambda_.1} parent=1 // pred_check
      _
    $region15: #{_lambda_.1} parent=1 // pred_check_branch
      %33 = sbr.rel (0) target = $region17
    $region16: #{_lambda_.1} parent=1 // pred_region
      _
    $region17: #{_lambda_.1} parent=1 // pred_fallthru
      _
    // Predicated region
    $region18: #{_lambda_.1} parent=1 // pred_check
      _
    $region19: #{_lambda_.1} parent=1 // pred_check_branch
      %35 = sbr.rel (0) target = $region21
    $region20: #{_lambda_.1} parent=1 // pred_region
      _
    $region21: #{_lambda_.1} parent=1 // pred_fallthru
      _
    // Predicated region
    $region22: #{_lambda_.1} parent=1 // pred_check
      _
    $region23: #{_lambda_.1} parent=1 // pred_check_branch
      %37 = sbr.rel (0) target = $region25
    $region24: #{_lambda_.1} parent=1 // pred_region
      _
    $region25: #{_lambda_.1} parent=1 // pred_fallthru
      _
    // Predicated region
    $region26: #{_lambda_.1} parent=1 // pred_check
      _
    $region27: #{_lambda_.1} parent=1 // pred_check_branch
      %39 = sbr.rel (0) target = $region29
    $region28: #{_lambda_.1} parent=1 // pred_region
      _
    $region29: #{_lambda_.1} parent=1 // pred_fallthru
      _
    // Predicated region
    $region30: #{_lambda_.1} parent=1 // pred_check
      _
    $region31: #{_lambda_.1} parent=1 // pred_check_branch
      %41 = sbr.rel (0) target = $region33
    $region32: #{_lambda_.1} parent=1 // pred_region
      _
    $region33: #{_lambda_.1} parent=1 // pred_fallthru
      _
    // Predicated region
    $region34: #{_lambda_.1} parent=1 // pred_check
      _
    $region35: #{_lambda_.1} parent=1 // pred_check_branch
      %43 = sbr.rel (0) target = $region37
    $region36: #{_lambda_.1} parent=1 // pred_region
      %44 = dma.done [#allocation3], 512
    $region37: #{_lambda_.1} parent=1 // pred_fallthru
      _
    %v45 = vld [vmem:[%s0] sm:$0xff]
    %v46 = vld [vmem:[%s0 + $0x8] sm:$0xff]
    %v47 = vld [vmem:[%s0 + $0x10] sm:$0xff]
    %v48 = vld [vmem:[%s0 + $0x18] sm:$0xff]
    %v49 = vld [vmem:[%s0 + $0x20] sm:$0xff]
    %v50 = vld [vmem:[%s0 + $0x28] sm:$0xff]
    %v51 = vld [vmem:[%s0 + $0x30] sm:$0xff]
    %v52 = vld [vmem:[%s0 + $0x38] sm:$0xff]
    %v53 = vld [vmem:[%s1] sm:$0xff]
    %v54 = vld [vmem:[#allocation2] sm:$0xff]
    %v55 = vld [vmem:[#allocation2 + $0x8] sm:$0xff]
    %v56 = vld [vmem:[#allocation2 + $0x10] sm:$0xff]
    %v57 = vld [vmem:[#allocation2 + $0x18] sm:$0xff]
    %v58 = vld [vmem:[%s3] sm:$0x1]
    %v60 = vlaneseq
    %v61 = vshrl.u32 %v60, 7
    %v62 = vsub.s32 0, %v61
    %v63 = vrot.slane %v58, %v62
    %vm65 = vcmask 261120
    %v67 = vsel %vm65, %v53, 0
    %69 = vmatprep.subr.mxu0 0.0
    %70 = vmatpush1.msra.mxu0 0.0
    %71 = vmatprep.subr.mxu0 0.0
    %72 = vmatpush1.msra.mxu0 0.0
    %73 = vmatprep.subr.mxu0 0.0
    %74 = vmatpush1.msra.mxu0 0.0
    %75 = vmatprep.subr.mxu0 0.0
    %76 = vmatpush1.msra.mxu0 0.0
    %77 = vmatprep.subr.mxu0 0.0
    %78 = vmatpush1.msra.mxu0 0.0
    %79 = vmatprep.subr.mxu0 0.0
    %80 = vmatpush1.msra.mxu0 0.0
    %81 = vmatprep.subr.mxu0 0.0
    %82 = vmatpush1.msra.mxu0 0.0
    %83 = vmatprep.subr.mxu0 0.0
    %84 = vmatpush1.msra.mxu0 0.0
    %85 = vmatprep.subr.mxu0 0.0
    %86 = vmatpush1.msra.mxu0 0.0
    %87 = vmatprep.subr.mxu0 0.0
    %88 = vmatpush1.msra.mxu0 0.0
    %89 = vmatprep.subr.mxu0 0.0
    %90 = vmatpush1.msra.mxu0 0.0
    %91 = vmatprep.subr.mxu0 0.0
    %92 = vmatpush1.msra.mxu0 0.0
    %93 = vmatprep.subr.mxu0 0.0
    %94 = vmatpush1.msra.mxu0 %v57
    %95 = vmatprep.subr.mxu0 0.0
    %96 = vmatpush1.msra.mxu0 %v56
    %97 = vmatprep.subr.mxu0 0.0
    %98 = vmatpush1.msra.mxu0 %v55
    %99 = vmatprep.subr.mxu0 0.0
    %100 = vmatpush1.msra.mxu0 %v54
    %101 = vmatprep.subr.mxu0 0.0
    %102 = vmatpush2.msra.mxu0 0.0
    %103 = vmatprep.subr.mxu0 0.0
    %104 = vmatpush2.msra.mxu0 0.0
    %105 = vmatprep.subr.mxu0 0.0
    %106 = vmatpush2.msra.mxu0 0.0
    %107 = vmatprep.subr.mxu0 0.0
    %108 = vmatpush2.msra.mxu0 0.0
    %109 = vmatprep.subr.mxu0 0.0
    %110 = vmatpush2.msra.mxu0 0.0
    %111 = vmatprep.subr.mxu0 0.0
    %112 = vmatpush2.msra.mxu0 0.0
    %113 = vmatprep.subr.mxu0 0.0
    %114 = vmatpush2.msra.mxu0 0.0
    %115 = vmatprep.subr.mxu0 0.0
    %116 = vmatpush2.msra.mxu0 0.0
    %117 = vmatprep.subr.mxu0 0.0
    %118 = vmatpush2.msra.mxu0 0.0
    %119 = vmatprep.subr.mxu0 0.0
    %120 = vmatpush2.msra.mxu0 0.0
    %121 = vmatprep.subr.mxu0 0.0
    %122 = vmatpush2.msra.mxu0 0.0
    %123 = vmatprep.subr.mxu0 0.0
    %124 = vmatpush2.msra.mxu0 0.0
    %125 = vmatprep.subr.mxu0 0.0
    %126 = vmatpush2.msra.mxu0 0.0
    %127 = vmatprep.subr.mxu0 0.0
    %128 = vmatpush2.msra.mxu0 0.0
    %129 = vmatprep.subr.mxu0 0.0
    %130 = vmatpush2.msra.mxu0 0.0
    %131 = vmatprep.subr.mxu0 0.0
    %132 = vmatpush2.msra.mxu0 0.0
    %133 = vmatprep.mubr.f32.mxu0 0.0
    %134 = vmatmul.mubr.f32.gmra.mxu0 %v67
    %v135 = vpop.f32.mrf.mxu0
    %v136 = vadd.f32 %v63, %v135
    %v137 = vpop.f32.mrf.mxu0
    %138 = vdwg.mxu0
    %v139 = vld [vmem:[%s4] sm:$0xff]
    %v140 = vld [vmem:[%s4 + $0x8] sm:$0xff]
    %v141 = vld [vmem:[%s4 + $0x10] sm:$0xff]
    %v142 = vld [vmem:[%s4 + $0x18] sm:$0xff]
    %v144 = vsel %vm65, %v136, 0
    %146 = vmatprep.subr.mxu0 0.0
    %147 = vmatpush1.msra.mxu0 0.0
    %148 = vmatprep.subr.mxu0 0.0
    %149 = vmatpush1.msra.mxu0 0.0
    %150 = vmatprep.subr.mxu0 0.0
    %151 = vmatpush1.msra.mxu0 0.0
    %152 = vmatprep.subr.mxu0 0.0
    %153 = vmatpush1.msra.mxu0 0.0
    %154 = vmatprep.subr.mxu0 0.0
    %155 = vmatpush1.msra.mxu0 0.0
    %156 = vmatprep.subr.mxu0 0.0
    %157 = vmatpush1.msra.mxu0 0.0
    %158 = vmatprep.subr.mxu0 0.0
    %159 = vmatpush1.msra.mxu0 0.0
    %160 = vmatprep.subr.mxu0 0.0
    %161 = vmatpush1.msra.mxu0 0.0
    %162 = vmatprep.subr.mxu0 0.0
    %163 = vmatpush1.msra.mxu0 0.0
    %164 = vmatprep.subr.mxu0 0.0
    %165 = vmatpush1.msra.mxu0 0.0
    %166 = vmatprep.subr.mxu0 0.0
    %167 = vmatpush1.msra.mxu0 0.0
    %168 = vmatprep.subr.mxu0 0.0
    %169 = vmatpush1.msra.mxu0 0.0
    %170 = vmatprep.subr.mxu0 0.0
    %171 = vmatpush1.msra.mxu0 %v142
    %172 = vmatprep.subr.mxu0 0.0
    %173 = vmatpush1.msra.mxu0 %v141
    %174 = vmatprep.subr.mxu0 0.0
    %175 = vmatpush1.msra.mxu0 %v140
    %176 = vmatprep.subr.mxu0 0.0
    %177 = vmatpush1.msra.mxu0 %v139
    %178 = vmatprep.subr.mxu0 0.0
    %179 = vmatpush2.msra.mxu0 0.0
    %180 = vmatprep.subr.mxu0 0.0
    %181 = vmatpush2.msra.mxu0 0.0
    %182 = vmatprep.subr.mxu0 0.0
    %183 = vmatpush2.msra.mxu0 0.0
    %184 = vmatprep.subr.mxu0 0.0
    %185 = vmatpush2.msra.mxu0 0.0
    %186 = vmatprep.subr.mxu0 0.0
    %187 = vmatpush2.msra.mxu0 0.0
    %188 = vmatprep.subr.mxu0 0.0
    %189 = vmatpush2.msra.mxu0 0.0
    %190 = vmatprep.subr.mxu0 0.0
    %191 = vmatpush2.msra.mxu0 0.0
    %192 = vmatprep.subr.mxu0 0.0
    %193 = vmatpush2.msra.mxu0 0.0
    %194 = vmatprep.subr.mxu0 0.0
    %195 = vmatpush2.msra.mxu0 0.0
    %196 = vmatprep.subr.mxu0 0.0
    %197 = vmatpush2.msra.mxu0 0.0
    %198 = vmatprep.subr.mxu0 0.0
    %199 = vmatpush2.msra.mxu0 0.0
    %200 = vmatprep.subr.mxu0 0.0
    %201 = vmatpush2.msra.mxu0 0.0
    %202 = vmatprep.subr.mxu0 0.0
    %203 = vmatpush2.msra.mxu0 0.0
    %204 = vmatprep.subr.mxu0 0.0
    %205 = vmatpush2.msra.mxu0 0.0
    %206 = vmatprep.subr.mxu0 0.0
    %207 = vmatpush2.msra.mxu0 0.0
    %208 = vmatprep.subr.mxu0 0.0
    %209 = vmatpush2.msra.mxu0 0.0
    %210 = vmatprep.mubr.f32.mxu0 0.0
    %211 = vmatmul.mubr.f32.gmra.mxu0 %v144
    %v212 = vpop.f32.mrf.mxu0
    %v213 = vadd.f32 0.0, %v212
    %v214 = vpop.f32.mrf.mxu0
    %215 = vdwg.mxu0
    %v216 = vld [vmem:[%s5] sm:$0x1]
    %v218 = vlaneseq
    %v219 = vshrl.u32 %v218, 7
    %v220 = vsub.s32 0, %v219
    %v221 = vrot.slane %v216, %v220
    %v223 = vmul.f32 %v136, %v221
    %v224 = vsel %vm65, %v223, 0.0
    %225 = vadd.xlane.f32.xlu0 %v224
    %v226 = vpop.xlane.xlu0 %225
    %v228 = vcombine.high %v213, %v213
    %v230 = vunpack.c.l.s4 1966171168
    %v231 = vunpack.c.0.s8 %v230
    %v232 = vlaneseq
    %v233 = vshrl.u32 %v232, 7
    %v234 = vsub.s32 %v231, %v233
    %v235 = vrot.slane %v213, %v234
    %v237 = vunpack.c.l.s4 1966171168
    %v238 = vunpack.c.0.s8 %v237
    %v239 = vlaneseq
    %v240 = vshrl.u32 %v239, 7
    %v241 = vsub.s32 %v238, %v240
    %v242 = vrot.slane %v228, %v241
    %v243 = vcombine.high %v235, %v235
    %v244 = vcombine.high %v242, %v242
    %v246 = vunpack.c.l.s4 1966171168
    %v247 = vunpack.c.0.s8 %v246
    %v248 = vlaneseq
    %v249 = vshrl.u32 %v248, 7
    %v250 = vsub.s32 %v247, %v249
    %v251 = vrot.slane %v235, %v250
    %v253 = vunpack.c.l.s4 1966171168
    %v254 = vunpack.c.0.s8 %v253
    %v255 = vlaneseq
    %v256 = vshrl.u32 %v255, 7
    %v257 = vsub.s32 %v254, %v256
    %v258 = vrot.slane %v242, %v257
    %v260 = vunpack.c.l.s4 1966171168
    %v261 = vunpack.c.0.s8 %v260
    %v262 = vlaneseq
    %v263 = vshrl.u32 %v262, 7
    %v264 = vsub.s32 %v261, %v263
    %v265 = vrot.slane %v243, %v264
    %v267 = vunpack.c.l.s4 1966171168
    %v268 = vunpack.c.0.s8 %v267
    %v269 = vlaneseq
    %v270 = vshrl.u32 %v269, 7
    %v271 = vsub.s32 %v268, %v270
    %v272 = vrot.slane %v244, %v271
    %v273 = vcombine.high %v251, %v251
    %v274 = vcombine.high %v258, %v258
    %v275 = vcombine.high %v265, %v265
    %v276 = vcombine.high %v272, %v272
    %v277 = vlaneseq
    %v278 = vshrl.u32 %v277, 7
    %v279 = vsub.s32 0, %v278
    %v280 = vrot.slane %v251, %v279
    %v281 = vlaneseq
    %v282 = vshrl.u32 %v281, 7
    %v283 = vsub.s32 0, %v282
    %v284 = vrot.slane %v265, %v283
    %v285 = vlaneseq
    %v286 = vshrl.u32 %v285, 7
    %v287 = vsub.s32 0, %v286
    %v288 = vrot.slane %v273, %v287
    %v289 = vlaneseq
    %v290 = vshrl.u32 %v289, 7
    %v291 = vsub.s32 0, %v290
    %v292 = vrot.slane %v275, %v291
    %v293 = vlaneseq
    %v294 = vshrl.u32 %v293, 7
    %v295 = vsub.s32 0, %v294
    %v296 = vrot.slane %v258, %v295
    %v297 = vlaneseq
    %v298 = vshrl.u32 %v297, 7
    %v299 = vsub.s32 0, %v298
    %v300 = vrot.slane %v272, %v299
    %v301 = vlaneseq
    %v302 = vshrl.u32 %v301, 7
    %v303 = vsub.s32 0, %v302
    %v304 = vrot.slane %v274, %v303
    %v305 = vlaneseq
    %v306 = vshrl.u32 %v305, 7
    %v307 = vsub.s32 0, %v306
    %v308 = vrot.slane %v276, %v307
    %v317 = vmul.f32 %v45, %v280
    %v318 = vmul.f32 %v46, %v284
    %v319 = vmul.f32 %v47, %v288
    %v320 = vmul.f32 %v48, %v292
    %v321 = vmul.f32 %v49, %v296
    %v322 = vmul.f32 %v50, %v300
    %v323 = vmul.f32 %v51, %v304
    %v324 = vmul.f32 %v52, %v308
    %v325 = vsel %vm65, %v317, 0.0
    %326 = vadd.xlane.f32.xlu0 %v325
    %v327 = vpop.xlane.xlu0 %326
    %v328 = vsel %vm65, %v318, 0.0
    %329 = vadd.xlane.f32.xlu0 %v328
    %v330 = vpop.xlane.xlu0 %329
    %v331 = vsel %vm65, %v319, 0.0
    %332 = vadd.xlane.f32.xlu0 %v331
    %v333 = vpop.xlane.xlu0 %332
    %v334 = vsel %vm65, %v320, 0.0
    %335 = vadd.xlane.f32.xlu0 %v334
    %v336 = vpop.xlane.xlu0 %335
    %v337 = vsel %vm65, %v321, 0.0
    %338 = vadd.xlane.f32.xlu0 %v337
    %v339 = vpop.xlane.xlu0 %338
    %v340 = vsel %vm65, %v322, 0.0
    %341 = vadd.xlane.f32.xlu0 %v340
    %v342 = vpop.xlane.xlu0 %341
    %v343 = vsel %vm65, %v323, 0.0
    %344 = vadd.xlane.f32.xlu0 %v343
    %v345 = vpop.xlane.xlu0 %344
    %v346 = vsel %vm65, %v324, 0.0
    %347 = vadd.xlane.f32.xlu0 %v346
    %v348 = vpop.xlane.xlu0 %347
    %v350 = vlaneseq
    %v351 = vshrl.u32 %v350, 7
    %v352 = vsub.s32 0, %v351
    %v353 = vrot.slane %v226, %v352
    %v354 = vlaneseq
    %v355 = vshrl.u32 %v354, 7
    %v356 = vsub.s32 1, %v355
    %v357 = vrot.slane %v226, %v356
    %v358 = vlaneseq
    %v359 = vshrl.u32 %v358, 7
    %v360 = vsub.s32 2, %v359
    %v361 = vrot.slane %v226, %v360
    %v362 = vlaneseq
    %v363 = vshrl.u32 %v362, 7
    %v364 = vsub.s32 3, %v363
    %v365 = vrot.slane %v226, %v364
    %v366 = vlaneseq
    %v367 = vshrl.u32 %v366, 7
    %v368 = vsub.s32 4, %v367
    %v369 = vrot.slane %v226, %v368
    %v370 = vlaneseq
    %v371 = vshrl.u32 %v370, 7
    %v372 = vsub.s32 5, %v371
    %v373 = vrot.slane %v226, %v372
    %v374 = vlaneseq
    %v375 = vshrl.u32 %v374, 7
    %v376 = vsub.s32 6, %v375
    %v377 = vrot.slane %v226, %v376
    %v378 = vlaneseq
    %v379 = vshrl.u32 %v378, 7
    %v380 = vsub.s32 7, %v379
    %v381 = vrot.slane %v226, %v380
    %v390 = vadd.f32 %v327, %v353
    %v391 = vadd.f32 %v330, %v357
    %v392 = vadd.f32 %v333, %v361
    %v393 = vadd.f32 %v336, %v365
    %v394 = vadd.f32 %v339, %v369
    %v395 = vadd.f32 %v342, %v373
    %v396 = vadd.f32 %v345, %v377
    %v397 = vadd.f32 %v348, %v381
    %406 = vset.pattern.permute.xlu0 0
    %407 = vperm.xlu0 %406, %v390
    %v408 = vpop.permute.xlu0 %407
    %409 = vset.pattern.permute.xlu0 0
    %410 = vperm.xlu0 %409, %v391
    %v411 = vpop.permute.xlu0 %410
    %412 = vset.pattern.permute.xlu0 0
    %413 = vperm.xlu0 %412, %v392
    %v414 = vpop.permute.xlu0 %413
    %415 = vset.pattern.permute.xlu0 0
    %416 = vperm.xlu0 %415, %v393
    %v417 = vpop.permute.xlu0 %416
    %418 = vset.pattern.permute.xlu0 0
    %419 = vperm.xlu0 %418, %v394
    %v420 = vpop.permute.xlu0 %419
    %421 = vset.pattern.permute.xlu0 0
    %422 = vperm.xlu0 %421, %v395
    %v423 = vpop.permute.xlu0 %422
    %424 = vset.pattern.permute.xlu0 0
    %425 = vperm.xlu0 %424, %v396
    %v426 = vpop.permute.xlu0 %425
    %427 = vset.pattern.permute.xlu0 0
    %428 = vperm.xlu0 %427, %v397
    %v429 = vpop.permute.xlu0 %428
    %v430 = vlaneseq
    %v431 = vand.u32 %v430, 127
    %v432 = vlaneseq
    %v433 = vshrl.u32 %v432, 7
    %v434 = vsub.s32 %v431, %v433
    %v435 = vrot.slane %v408, %v434
    %v436 = vlaneseq
    %v437 = vshrl.u32 %v436, 7
    %v438 = vsub.s32 %v431, %v437
    %v439 = vrot.slane %v411, %v438
    %v440 = vlaneseq
    %v441 = vshrl.u32 %v440, 7
    %v442 = vsub.s32 %v431, %v441
    %v443 = vrot.slane %v414, %v442
    %v444 = vlaneseq
    %v445 = vshrl.u32 %v444, 7
    %v446 = vsub.s32 %v431, %v445
    %v447 = vrot.slane %v417, %v446
    %v448 = vlaneseq
    %v449 = vshrl.u32 %v448, 7
    %v450 = vsub.s32 %v431, %v449
    %v451 = vrot.slane %v420, %v450
    %v452 = vlaneseq
    %v453 = vshrl.u32 %v452, 7
    %v454 = vsub.s32 %v431, %v453
    %v455 = vrot.slane %v423, %v454
    %v456 = vlaneseq
    %v457 = vshrl.u32 %v456, 7
    %v458 = vsub.s32 %v431, %v457
    %v459 = vrot.slane %v426, %v458
    %v460 = vlaneseq
    %v461 = vshrl.u32 %v460, 7
    %v462 = vsub.s32 %v431, %v461
    %v463 = vrot.slane %v429, %v462
    %vm464 = vcmask 1041409
    %v465 = vsel %vm464, %v439, %v435
    %vm466 = vcmask 1042434
    %v467 = vsel %vm466, %v443, %v465
    %vm468 = vcmask 1043459
    %v469 = vsel %vm468, %v447, %v467
    %vm470 = vcmask 1044484
    %v471 = vsel %vm470, %v451, %v469
    %vm472 = vcmask 1045509
    %v473 = vsel %vm472, %v455, %v471
    %vm474 = vcmask 1046534
    %v475 = vsel %vm474, %v459, %v473
    %vm476 = vcmask 1047559
    %v477 = vsel %vm476, %v463, %v475
    %vm479 = vcmask 64512
    %v480 = vsel %vm479, %v477, -inf
    %481 = vmax.xlane.f32.xlu0 %v480
    %v482 = vpop.xlane.xlu0 %481
    %v484 = vlaneseq
    %v485 = vshrl.u32 %v484, 7
    %v486 = vsub.s32 0, %v485
    %v487 = vrot.slane %v482, %v486
    %v488 = vlaneseq
    %v489 = vshrl.u32 %v488, 7
    %v490 = vsub.s32 1, %v489
    %v491 = vrot.slane %v482, %v490
    %v492 = vlaneseq
    %v493 = vshrl.u32 %v492, 7
    %v494 = vsub.s32 2, %v493
    %v495 = vrot.slane %v482, %v494
    %v496 = vlaneseq
    %v497 = vshrl.u32 %v496, 7
    %v498 = vsub.s32 3, %v497
    %v499 = vrot.slane %v482, %v498
    %v500 = vlaneseq
    %v501 = vshrl.u32 %v500, 7
    %v502 = vsub.s32 4, %v501
    %v503 = vrot.slane %v482, %v502
    %v504 = vlaneseq
    %v505 = vshrl.u32 %v504, 7
    %v506 = vsub.s32 5, %v505
    %v507 = vrot.slane %v482, %v506
    %v508 = vlaneseq
    %v509 = vshrl.u32 %v508, 7
    %v510 = vsub.s32 6, %v509
    %v511 = vrot.slane %v482, %v510
    %v512 = vlaneseq
    %v513 = vshrl.u32 %v512, 7
    %v514 = vsub.s32 7, %v513
    %v515 = vrot.slane %v482, %v514
    %v524 = vsub.f32 %v390, %v487
    %v525 = vsub.f32 %v391, %v491
    %v526 = vsub.f32 %v392, %v495
    %v527 = vsub.f32 %v393, %v499
    %v528 = vsub.f32 %v394, %v503
    %v529 = vsub.f32 %v395, %v507
    %v530 = vsub.f32 %v396, %v511
    %v531 = vsub.f32 %v397, %v515
    %v532 = vmul.f32 %v524, 1.442695
    %v533 = vpow.pop %v532
    %v534 = vmul.f32 %v525, 1.442695
    %v535 = vpow.pop %v534
    %v536 = vmul.f32 %v526, 1.442695
    %v537 = vpow.pop %v536
    %v538 = vmul.f32 %v527, 1.442695
    %v539 = vpow.pop %v538
    %v540 = vmul.f32 %v528, 1.442695
    %v541 = vpow.pop %v540
    %v542 = vmul.f32 %v529, 1.442695
    %v543 = vpow.pop %v542
    %v544 = vmul.f32 %v530, 1.442695
    %v545 = vpow.pop %v544
    %v546 = vmul.f32 %v531, 1.442695
    %v547 = vpow.pop %v546
    %556 = vset.pattern.permute.xlu0 0
    %557 = vperm.xlu0 %556, %v533
    %v558 = vpop.permute.xlu0 %557
    %559 = vset.pattern.permute.xlu0 0
    %560 = vperm.xlu0 %559, %v535
    %v561 = vpop.permute.xlu0 %560
    %562 = vset.pattern.permute.xlu0 0
    %563 = vperm.xlu0 %562, %v537
    %v564 = vpop.permute.xlu0 %563
    %565 = vset.pattern.permute.xlu0 0
    %566 = vperm.xlu0 %565, %v539
    %v567 = vpop.permute.xlu0 %566
    %568 = vset.pattern.permute.xlu0 0
    %569 = vperm.xlu0 %568, %v541
    %v570 = vpop.permute.xlu0 %569
    %571 = vset.pattern.permute.xlu0 0
    %572 = vperm.xlu0 %571, %v543
    %v573 = vpop.permute.xlu0 %572
    %574 = vset.pattern.permute.xlu0 0
    %575 = vperm.xlu0 %574, %v545
    %v576 = vpop.permute.xlu0 %575
    %577 = vset.pattern.permute.xlu0 0
    %578 = vperm.xlu0 %577, %v547
    %v579 = vpop.permute.xlu0 %578
    %v580 = vlaneseq
    %v581 = vshrl.u32 %v580, 7
    %v582 = vsub.s32 %v431, %v581
    %v583 = vrot.slane %v558, %v582
    %v584 = vlaneseq
    %v585 = vshrl.u32 %v584, 7
    %v586 = vsub.s32 %v431, %v585
    %v587 = vrot.slane %v561, %v586
    %v588 = vlaneseq
    %v589 = vshrl.u32 %v588, 7
    %v590 = vsub.s32 %v431, %v589
    %v591 = vrot.slane %v564, %v590
    %v592 = vlaneseq
    %v593 = vshrl.u32 %v592, 7
    %v594 = vsub.s32 %v431, %v593
    %v595 = vrot.slane %v567, %v594
    %v596 = vlaneseq
    %v597 = vshrl.u32 %v596, 7
    %v598 = vsub.s32 %v431, %v597
    %v599 = vrot.slane %v570, %v598
    %v600 = vlaneseq
    %v601 = vshrl.u32 %v600, 7
    %v602 = vsub.s32 %v431, %v601
    %v603 = vrot.slane %v573, %v602
    %v604 = vlaneseq
    %v605 = vshrl.u32 %v604, 7
    %v606 = vsub.s32 %v431, %v605
    %v607 = vrot.slane %v576, %v606
    %v608 = vlaneseq
    %v609 = vshrl.u32 %v608, 7
    %v610 = vsub.s32 %v431, %v609
    %v611 = vrot.slane %v579, %v610
    %v612 = vsel %vm464, %v587, %v583
    %v613 = vsel %vm466, %v591, %v612
    %v614 = vsel %vm468, %v595, %v613
    %v615 = vsel %vm470, %v599, %v614
    %v616 = vsel %vm472, %v603, %v615
    %v617 = vsel %vm474, %v607, %v616
    %v618 = vsel %vm476, %v611, %v617
    %v620 = vsel %vm479, %v618, 0.0
    %621 = vadd.xlane.f32.xlu0 %v620
    %v622 = vpop.xlane.xlu0 %621
    %v624 = vlaneseq
    %v625 = vshrl.u32 %v624, 7
    %v626 = vsub.s32 0, %v625
    %v627 = vrot.slane %v622, %v626
    %v628 = vlaneseq
    %v629 = vshrl.u32 %v628, 7
    %v630 = vsub.s32 1, %v629
    %v631 = vrot.slane %v622, %v630
    %v632 = vlaneseq
    %v633 = vshrl.u32 %v632, 7
    %v634 = vsub.s32 2, %v633
    %v635 = vrot.slane %v622, %v634
    %v636 = vlaneseq
    %v637 = vshrl.u32 %v636, 7
    %v638 = vsub.s32 3, %v637
    %v639 = vrot.slane %v622, %v638
    %v640 = vlaneseq
    %v641 = vshrl.u32 %v640, 7
    %v642 = vsub.s32 4, %v641
    %v643 = vrot.slane %v622, %v642
    %v644 = vlaneseq
    %v645 = vshrl.u32 %v644, 7
    %v646 = vsub.s32 5, %v645
    %v647 = vrot.slane %v622, %v646
    %v648 = vlaneseq
    %v649 = vshrl.u32 %v648, 7
    %v650 = vsub.s32 6, %v649
    %v651 = vrot.slane %v622, %v650
    %v652 = vlaneseq
    %v653 = vshrl.u32 %v652, 7
    %v654 = vsub.s32 7, %v653
    %v655 = vrot.slane %v622, %v654
    %v664 = vrcp.pop %v627
    %v665 = vmul.f32 %v533, %v664
    %v666 = vrcp.pop %v631
    %v667 = vmul.f32 %v535, %v666
    %v668 = vrcp.pop %v635
    %v669 = vmul.f32 %v537, %v668
    %v670 = vrcp.pop %v639
    %v671 = vmul.f32 %v539, %v670
    %v672 = vrcp.pop %v643
    %v673 = vmul.f32 %v541, %v672
    %v674 = vrcp.pop %v647
    %v675 = vmul.f32 %v543, %v674
    %v676 = vrcp.pop %v651
    %v677 = vmul.f32 %v545, %v676
    %v678 = vrcp.pop %v655
    %v679 = vmul.f32 %v547, %v678
    %688 = vset.pattern.permute.xlu0 0
    %689 = vperm.xlu0 %688, %v665
    %v690 = vpop.permute.xlu0 %689
    %691 = vset.pattern.permute.xlu0 0
    %692 = vperm.xlu0 %691, %v667
    %v693 = vpop.permute.xlu0 %692
    %694 = vset.pattern.permute.xlu0 0
    %695 = vperm.xlu0 %694, %v669
    %v696 = vpop.permute.xlu0 %695
    %697 = vset.pattern.permute.xlu0 0
    %698 = vperm.xlu0 %697, %v671
    %v699 = vpop.permute.xlu0 %698
    %700 = vset.pattern.permute.xlu0 0
    %701 = vperm.xlu0 %700, %v673
    %v702 = vpop.permute.xlu0 %701
    %703 = vset.pattern.permute.xlu0 0
    %704 = vperm.xlu0 %703, %v675
    %v705 = vpop.permute.xlu0 %704
    %706 = vset.pattern.permute.xlu0 0
    %707 = vperm.xlu0 %706, %v677
    %v708 = vpop.permute.xlu0 %707
    %709 = vset.pattern.permute.xlu0 0
    %710 = vperm.xlu0 %709, %v679
    %v711 = vpop.permute.xlu0 %710
    %v712 = vlaneseq
    %v713 = vshrl.u32 %v712, 7
    %v714 = vsub.s32 %v431, %v713
    %v715 = vrot.slane %v690, %v714
    %v716 = vlaneseq
    %v717 = vshrl.u32 %v716, 7
    %v718 = vsub.s32 %v431, %v717
    %v719 = vrot.slane %v693, %v718
    %v720 = vlaneseq
    %v721 = vshrl.u32 %v720, 7
    %v722 = vsub.s32 %v431, %v721
    %v723 = vrot.slane %v696, %v722
    %v724 = vlaneseq
    %v725 = vshrl.u32 %v724, 7
    %v726 = vsub.s32 %v431, %v725
    %v727 = vrot.slane %v699, %v726
    %v728 = vlaneseq
    %v729 = vshrl.u32 %v728, 7
    %v730 = vsub.s32 %v431, %v729
    %v731 = vrot.slane %v702, %v730
    %v732 = vlaneseq
    %v733 = vshrl.u32 %v732, 7
    %v734 = vsub.s32 %v431, %v733
    %v735 = vrot.slane %v705, %v734
    %v736 = vlaneseq
    %v737 = vshrl.u32 %v736, 7
    %v738 = vsub.s32 %v431, %v737
    %v739 = vrot.slane %v708, %v738
    %v740 = vlaneseq
    %v741 = vshrl.u32 %v740, 7
    %v742 = vsub.s32 %v431, %v741
    %v743 = vrot.slane %v711, %v742
    %v744 = vsel %vm464, %v719, %v715
    %v745 = vsel %vm466, %v723, %v744
    %v746 = vsel %vm468, %v727, %v745
    %v747 = vsel %vm470, %v731, %v746
    %v748 = vsel %vm472, %v735, %v747
    %v749 = vsel %vm474, %v739, %v748
    %v750 = vsel %vm476, %v743, %v749
    %752 = vst.msk [vmem:[%s9] sm:$0xff] %vm479, %v750
    %v761 = vmul.f32 %v690, %v45
    %v762 = vmul.f32 %v693, %v46
    %v763 = vmul.f32 %v696, %v47
    %v764 = vmul.f32 %v699, %v48
    %v765 = vmul.f32 %v702, %v49
    %v766 = vmul.f32 %v705, %v50
    %v767 = vmul.f32 %v708, %v51
    %v768 = vmul.f32 %v711, %v52
    %v769 = vsel %vm65, %v761, 0.0
    %v770 = vrot.slane %v769, 4
    %v771 = vadd.f32 %v769, %v770
    %v772 = vrot.slane %v771, 2
    %v773 = vadd.f32 %v771, %v772
    %v774 = vrot.slane %v773, 1
    %v775 = vadd.f32 %v773, %v774
    %v776 = vsel %vm65, %v762, 0.0
    %v777 = vrot.slane %v776, 4
    %v778 = vadd.f32 %v776, %v777
    %v779 = vrot.slane %v778, 2
    %v780 = vadd.f32 %v778, %v779
    %v781 = vrot.slane %v780, 1
    %v782 = vadd.f32 %v780, %v781
    %v783 = vsel %vm65, %v763, 0.0
    %v784 = vrot.slane %v783, 4
    %v785 = vadd.f32 %v783, %v784
    %v786 = vrot.slane %v785, 2
    %v787 = vadd.f32 %v785, %v786
    %v788 = vrot.slane %v787, 1
    %v789 = vadd.f32 %v787, %v788
    %v790 = vsel %vm65, %v764, 0.0
    %v791 = vrot.slane %v790, 4
    %v792 = vadd.f32 %v790, %v791
    %v793 = vrot.slane %v792, 2
    %v794 = vadd.f32 %v792, %v793
    %v795 = vrot.slane %v794, 1
    %v796 = vadd.f32 %v794, %v795
    %v797 = vsel %vm65, %v765, 0.0
    %v798 = vrot.slane %v797, 4
    %v799 = vadd.f32 %v797, %v798
    %v800 = vrot.slane %v799, 2
    %v801 = vadd.f32 %v799, %v800
    %v802 = vrot.slane %v801, 1
    %v803 = vadd.f32 %v801, %v802
    %v804 = vsel %vm65, %v766, 0.0
    %v805 = vrot.slane %v804, 4
    %v806 = vadd.f32 %v804, %v805
    %v807 = vrot.slane %v806, 2
    %v808 = vadd.f32 %v806, %v807
    %v809 = vrot.slane %v808, 1
    %v810 = vadd.f32 %v808, %v809
    %v811 = vsel %vm65, %v767, 0.0
    %v812 = vrot.slane %v811, 4
    %v813 = vadd.f32 %v811, %v812
    %v814 = vrot.slane %v813, 2
    %v815 = vadd.f32 %v813, %v814
    %v816 = vrot.slane %v815, 1
    %v817 = vadd.f32 %v815, %v816
    %v818 = vsel %vm65, %v768, 0.0
    %v819 = vrot.slane %v818, 4
    %v820 = vadd.f32 %v818, %v819
    %v821 = vrot.slane %v820, 2
    %v822 = vadd.f32 %v820, %v821
    %v823 = vrot.slane %v822, 1
    %v824 = vadd.f32 %v822, %v823
    %v825 = vsel %vm479, %v750, 0.0
    %826 = vadd.xlane.f32.xlu0 %v825
    %v827 = vpop.xlane.xlu0 %826
    %v828 = vld [vmem:[%s6] sm:$0xff]
    %v829 = vld [vmem:[%s6 + $0x8] sm:$0xff]
    %v830 = vld [vmem:[%s6 + $0x10] sm:$0xff]
    %v831 = vld [vmem:[%s6 + $0x18] sm:$0xff]
    %v832 = vld [vmem:[%s7] sm:$0x1]
    %v834 = vlaneseq
    %v835 = vshrl.u32 %v834, 7
    %v836 = vsub.s32 0, %v835
    %v837 = vrot.slane %v832, %v836
    %v839 = vmul.f32 %v837, %v827
    %v848 = vsel %vm464, %v782, %v775
    %v849 = vsel %vm466, %v789, %v848
    %v850 = vsel %vm468, %v796, %v849
    %v851 = vsel %vm470, %v803, %v850
    %v852 = vsel %vm472, %v810, %v851
    %v853 = vsel %vm474, %v817, %v852
    %v854 = vsel %vm476, %v824, %v853
    %v855 = vsel %vm65, %v854, 0
    %857 = vmatprep.subr.mxu0 0.0
    %858 = vmatpush1.msra.mxu0 0.0
    %859 = vmatprep.subr.mxu0 0.0
    %860 = vmatpush1.msra.mxu0 0.0
    %861 = vmatprep.subr.mxu0 0.0
    %862 = vmatpush1.msra.mxu0 0.0
    %863 = vmatprep.subr.mxu0 0.0
    %864 = vmatpush1.msra.mxu0 0.0
    %865 = vmatprep.subr.mxu0 0.0
    %866 = vmatpush1.msra.mxu0 0.0
    %867 = vmatprep.subr.mxu0 0.0
    %868 = vmatpush1.msra.mxu0 0.0
    %869 = vmatprep.subr.mxu0 0.0
    %870 = vmatpush1.msra.mxu0 0.0
    %871 = vmatprep.subr.mxu0 0.0
    %872 = vmatpush1.msra.mxu0 0.0
    %873 = vmatprep.subr.mxu0 0.0
    %874 = vmatpush1.msra.mxu0 0.0
    %875 = vmatprep.subr.mxu0 0.0
    %876 = vmatpush1.msra.mxu0 0.0
    %877 = vmatprep.subr.mxu0 0.0
    %878 = vmatpush1.msra.mxu0 0.0
    %879 = vmatprep.subr.mxu0 0.0
    %880 = vmatpush1.msra.mxu0 0.0
    %881 = vmatprep.subr.mxu0 0.0
    %882 = vmatpush1.msra.mxu0 %v831
    %883 = vmatprep.subr.mxu0 0.0
    %884 = vmatpush1.msra.mxu0 %v830
    %885 = vmatprep.subr.mxu0 0.0
    %886 = vmatpush1.msra.mxu0 %v829
    %887 = vmatprep.subr.mxu0 0.0
    %888 = vmatpush1.msra.mxu0 %v828
    %889 = vmatprep.subr.mxu0 0.0
    %890 = vmatpush2.msra.mxu0 0.0
    %891 = vmatprep.subr.mxu0 0.0
    %892 = vmatpush2.msra.mxu0 0.0
    %893 = vmatprep.subr.mxu0 0.0
    %894 = vmatpush2.msra.mxu0 0.0
    %895 = vmatprep.subr.mxu0 0.0
    %896 = vmatpush2.msra.mxu0 0.0
    %897 = vmatprep.subr.mxu0 0.0
    %898 = vmatpush2.msra.mxu0 0.0
    %899 = vmatprep.subr.mxu0 0.0
    %900 = vmatpush2.msra.mxu0 0.0
    %901 = vmatprep.subr.mxu0 0.0
    %902 = vmatpush2.msra.mxu0 0.0
    %903 = vmatprep.subr.mxu0 0.0
    %904 = vmatpush2.msra.mxu0 0.0
    %905 = vmatprep.subr.mxu0 0.0
    %906 = vmatpush2.msra.mxu0 0.0
    %907 = vmatprep.subr.mxu0 0.0
    %908 = vmatpush2.msra.mxu0 0.0
    %909 = vmatprep.subr.mxu0 0.0
    %910 = vmatpush2.msra.mxu0 0.0
    %911 = vmatprep.subr.mxu0 0.0
    %912 = vmatpush2.msra.mxu0 0.0
    %913 = vmatprep.subr.mxu0 0.0
    %914 = vmatpush2.msra.mxu0 0.0
    %915 = vmatprep.subr.mxu0 0.0
    %916 = vmatpush2.msra.mxu0 0.0
    %917 = vmatprep.subr.mxu0 0.0
    %918 = vmatpush2.msra.mxu0 0.0
    %919 = vmatprep.subr.mxu0 0.0
    %920 = vmatpush2.msra.mxu0 0.0
    %921 = vmatprep.mubr.f32.mxu0 0.0
    %922 = vmatmul.mubr.f32.gmra.mxu0 %v855
    %v923 = vpop.f32.mrf.mxu0
    %v924 = vadd.f32 %v839, %v923
    %v925 = vpop.f32.mrf.mxu0
    %926 = vdwg.mxu0
    %927 = vst [vmem:[%s8] sm:$0xff] %v924
    // Predicated region
    $region38: #{_lambda_.1} parent=1 // pred_check
      _
    $region39: #{_lambda_.1} parent=1 // pred_check_branch
      %929 = sbr.rel (0) target = $region41
    $region40: #{_lambda_.1} parent=1 // pred_region
      _
    $region41: #{_lambda_.1} parent=1 // pred_fallthru
      _
    // Predicated region
    $region42: #{_lambda_.1} parent=1 // pred_check
      _
    $region43: #{_lambda_.1} parent=1 // pred_check_branch
      %931 = sbr.rel (0) target = $region45
    $region44: #{_lambda_.1} parent=1 // pred_region
      _
    $region45: #{_lambda_.1} parent=1 // pred_fallthru
      _
    // Predicated region
    $region46: #{_lambda_.1} parent=1 // pred_check
      _
    $region47: #{_lambda_.1} parent=1 // pred_check_branch
      %933 = sbr.rel (0) target = $region49
    $region48: #{_lambda_.1} parent=1 // pred_region
      _
    $region49: #{_lambda_.1} parent=1 // pred_fallthru
      _
    // Predicated region
    $region50: #{_lambda_.1} parent=1 // pred_check
      _
    $region51: #{_lambda_.1} parent=1 // pred_check_branch
      %935 = sbr.rel (0) target = $region53
    $region52: #{_lambda_.1} parent=1 // pred_region
      _
    $region53: #{_lambda_.1} parent=1 // pred_fallthru
      _
    %936 = vsyncpa [#allocation3], 1

</llo_original>
